<compile_context>
chip_gen: v7x
topology: tpu7x:2x2x1
jax: 0.10.0
libtpu: 0.0.40
codegen_flags: <defaults>
</compile_context>

<pallas_src>
import numpy as np
import jax
import jax.numpy as jnp
from jax.experimental import pallas as pl
from jax.experimental.pallas import tpu as pltpu

MARGIN = 128  # lane-aligned zero margin inside the staging buffer; must be >= W + 1


def _border_masks(H, W):
    """(9, H*W) {0,1} masks: validity of each of the 9 taps at each output pixel."""
    HW = H * W
    i = np.arange(HW) // W
    j = np.arange(HW) % W
    masks = np.zeros((9, HW), np.float32)
    for kh in range(3):
        for kw in range(3):
            dy, dx = kh - 1, kw - 1
            ok = (i + dy >= 0) & (i + dy < H) & (j + dx >= 0) & (j + dx < W)
            masks[kh * 3 + kw] = ok.astype(np.float32)
    return jnp.asarray(masks)


def make_fused_kernel(B, Cin, cin_pad, H, W, Cmid, last_node):
    HW = H * W

    def kernel(x_ref, w2_ref, cb_ref, fcwT_ref, fcb_ref, mask_ref, pool_ref,
               out_ref, xbuf_ref, im2col_ref):
        # x_ref:      (B, Cin, H*W)            flattened NCHW input (free reshape)
        # w2_ref:     (Cmid, 9*cin_pad)        conv weights, tap-major im2col layout
        # cb_ref:     (Cmid, 1)                conv bias (broadcasts over lanes)
        # fcwT_ref:   (last_node, Cmid)        FC weights, transposed param-side
        # fcb_ref:    (last_node, 1)           FC bias (column)
        # mask_ref:   (9*cin_pad, H*W)         pre-expanded border-validity masks
        # pool_ref:   (B*HW, B)                block-ones/HW pooling matrix
        # out_ref:    (last_node, B)           transposed output
        # xbuf_ref:   (cin_pad, MARGIN+HW+MARGIN) zero-margin staging buffer
        # im2col_ref: (9*cin_pad, B*HW)        shared batched im2col slab

        # Zero the staging buffer ONCE: margins + padded-channel rows stay zero
        # across the whole (statically unrolled, tiny-B) staging loop.
        xbuf_ref[...] = jnp.zeros_like(xbuf_ref)

        # Stage all B images' taps directly into the shared im2col slab at
        # column offset b*HW (row offset t*cin_pad is sublane-aligned, the
        # column offset is lane-aligned).  Every element of im2col is written,
        # so no zero-init of that scratch is needed.
        for b in range(B):  # static unroll; heavy math is OUTSIDE this loop
            xbuf_ref[:Cin, MARGIN:MARGIN + HW] = x_ref[b]
            xb = xbuf_ref[...]                                    # (cin_pad, 2*MARGIN+HW)
            for kh in range(3):
                for kw in range(3):
                    t = kh * 3 + kw
                    s = (kh - 1) * W + (kw - 1)
                    shifted = xb[:, MARGIN + s:MARGIN + s + HW]   # (cin_pad, HW)
                    # Mask applied at write time using a ref-slice of the
                    # pre-expanded mask slab (no broadcast_in_dim per tap).
                    im2col_ref[t * cin_pad:(t + 1) * cin_pad,
                               b * HW:(b + 1) * HW] = (
                        shifted * mask_ref[t * cin_pad:(t + 1) * cin_pad, :])

        # Conv for the WHOLE batch as one weight-stationary MXU matmul
        #   (Cmid, 9*cin_pad) @ (9*cin_pad, B*HW) -> (Cmid, B*HW)
        y = jnp.dot(w2_ref[...], im2col_ref[...],
                    preferred_element_type=jnp.float32)
        y = jnp.maximum(y + cb_ref[...], 0.0)                     # bias + ReLU

        # Global average pool as a matmul against the block-ones/HW matrix:
        #   (Cmid, B*HW) @ (B*HW, B) -> (Cmid, B)   (rides on the MXU)
        pooled_cb = jnp.dot(y, pool_ref[...], preferred_element_type=jnp.float32)

        # Transposed FC head: (last_node, Cmid) @ (Cmid, B) + bias column.
        out_ref[...] = (
            jnp.dot(fcwT_ref[...], pooled_cb, preferred_element_type=jnp.float32)
            + fcb_ref[...]
        )

    return kernel


def model_wrapper_fea_forward(x_nchw, params):
    """Pallas forward for ModelWrapperFea: squeeze(model(x)).  x_nchw: (B, Cin, H, W)."""
    conv_w, conv_b, fc_w, fc_b = params          # conv_w: (Cmid, Cin, 3, 3) (OIHW)
    B, Cin, H, W = x_nchw.shape
    Cmid = conv_w.shape[0]
    last_node = fc_w.shape[1]
    HW = H * W
    cin_pad = ((Cin + 7) // 8) * 8               # sublane-tile aligned K blocks
    assert W + 1 <= MARGIN

    # One-time, param-side prep (free):
    #  * tap-major / channel-minor im2col conv-weight layout, channels padded to
    #    cin_pad so in-kernel tap writes are (8,128)-tile aligned,
    #  * transposed FC weights (channels on sublanes in the kernel),
    #  * pre-expanded border masks (one row block per tap, cin_pad rows each),
    #  * block-diagonal pooling matrix (B*HW, B) with 1/HW entries.
    w_t = jnp.transpose(conv_w, (0, 2, 3, 1))                     # (Cmid, 3, 3, Cin)
    w_t = jnp.pad(w_t, ((0, 0), (0, 0), (0, 0), (0, cin_pad - Cin)))
    w2 = w_t.reshape(Cmid, 9 * cin_pad)
    cb = conv_b.reshape(Cmid, 1)
    fcwT = fc_w.T                                                  # (last_node, Cmid)
    fcb_col = fc_b.reshape(last_node, 1)
    mask_exp = jnp.repeat(_border_masks(H, W), cin_pad, axis=0)    # (9*cin_pad, HW)

    pool_np = np.zeros((B * HW, B), np.float32)
    for b in range(B):
        pool_np[b * HW:(b + 1) * HW, b] = 1.0 / HW
    pool = jnp.asarray(pool_np)

    # Free view of the NCHW input: no transpose, no jnp.pad HBM pre-pass.
    x_flat = x_nchw.reshape(B, Cin, HW)

    kernel = make_fused_kernel(B, Cin, cin_pad, H, W, Cmid, last_node)
    out_T = pl.pallas_call(
        kernel,
        out_shape=jax.ShapeDtypeStruct((last_node, B), jnp.float32),
        grid=(1,),  # whole (tiny) batch in one step; see TODO above for scaling
        in_specs=[
            pl.BlockSpec((B, Cin, HW), lambda i: (0, 0, 0)),
            pl.BlockSpec((Cmid, 9 * cin_pad), lambda i: (0, 0)),
            pl.BlockSpec((Cmid, 1), lambda i: (0, 0)),
            pl.BlockSpec((last_node, Cmid), lambda i: (0, 0)),
            pl.BlockSpec((last_node, 1), lambda i: (0, 0)),
            pl.BlockSpec((9 * cin_pad, HW), lambda i: (0, 0)),
            pl.BlockSpec((B * HW, B), lambda i: (0, 0)),
        ],
        out_specs=pl.BlockSpec((last_node, B), lambda i: (0, 0)),
        scratch_shapes=[
            pltpu.VMEM((cin_pad, 2 * MARGIN + HW), jnp.float32),   # zero-margin stage
            pltpu.VMEM((9 * cin_pad, B * HW), jnp.float32),        # batched im2col
        ],
        compiler_params=pltpu.CompilerParams(dimension_semantics=("arbitrary",)),
    )(x_flat, w2, cb, fcwT, fcb_col, mask_exp, pool)

    out = out_T.T  # tiny (last_node, B) -> (B, last_node) transpose, outside the kernel

    # ModelWrapperFea.forward: torch.squeeze(model(x)).  NOTE: for B == 1 this
    # also drops the batch dim -- intentional, it matches torch.squeeze semantics.
    return jnp.squeeze(out)


def reference_forward(x, params):
    """Pure-XLA reference of the same backbone + squeeze (for validation)."""
    conv_w, conv_b, fc_w, fc_b = params
    y = jax.lax.conv_general_dilated(
        x, conv_w, window_strides=(1, 1), padding=((1, 1), (1, 1)),
        dimension_numbers=("NCHW", "OIHW", "NCHW"),
        precision=jax.lax.Precision.HIGHEST)
    y = jnp.maximum(y + conv_b.reshape(1, -1, 1, 1), 0.0)
    pooled = jnp.mean(y, axis=(2, 3))
    out = pooled @ fc_w + fc_b
    return jnp.squeeze(out)


def init_params(key, Cin, Cmid, last_node):
    k1, k2, k3, k4 = jax.random.split(key, 4)
    conv_w = jax.random.normal(k1, (Cmid, Cin, 3, 3), jnp.float32) * 0.1  # OIHW
    conv_b = jax.random.normal(k2, (Cmid,), jnp.float32) * 0.01
    fc_w = jax.random.normal(k3, (Cmid, last_node), jnp.float32) * 0.1
    fc_b = jax.random.normal(k4, (last_node,), jnp.float32) * 0.01
    return conv_w, conv_b, fc_w, fc_b


if __name__ == "__main__":
    B, Cin, H, W = 2, 4, 16, 16
    Cmid, last_node = 8, 32

    key = jax.random.PRNGKey(0)
    kx, kp = jax.random.split(key)
    x = jax.random.normal(kx, (B, Cin, H, W), jnp.float32)
    params = init_params(kp, Cin, Cmid, last_node)

    out = jax.block_until_ready(model_wrapper_fea_forward(x, params))
    assert out.shape == (B, last_node), out.shape

    ref = jax.block_until_ready(reference_forward(x, params))
    # Tolerance accounts for MXU default-precision f32 (bf16-pass decomposition)
    # in the kernel vs. the reference's Precision.HIGHEST conv/matmuls.
    max_err = float(jnp.max(jnp.abs(out - ref)))
    assert max_err < 2e-2, f"mismatch vs XLA reference: max_err={max_err}"
    print("KERNEL_OK")
</pallas_src>

<mosaic_0001>
module attributes {stable_mosaic.version = 11 : i64} {
  func.func @kernel(%arg0: i32, %arg1: memref<2x4x256xf32, #tpu.memory_space<vmem>>, %arg2: memref<8x72xf32, #tpu.memory_space<vmem>>, %arg3: memref<8x1xf32, #tpu.memory_space<vmem>>, %arg4: memref<32x8xf32, #tpu.memory_space<vmem>>, %arg5: memref<32x1xf32, #tpu.memory_space<vmem>>, %arg6: memref<72x256xf32, #tpu.memory_space<vmem>>, %arg7: memref<512x2xf32, #tpu.memory_space<vmem>>, %arg8: memref<32x2xf32, #tpu.memory_space<vmem>>, %arg9: memref<8x512xf32, #tpu.memory_space<vmem>>, %arg10: memref<72x512xf32, #tpu.memory_space<vmem>>) attributes {dimension_semantics = [#tpu.dimension_semantics<arbitrary>], iteration_bounds = array<i64: 1>, scalar_prefetch = 0 : i64, scratch_operands = 2 : i64, tpu.core_type = #tpu.core_type<tc>, window_params = [{pipeline_mode = #tpu.pipeline_mode<synchronous>, transform_indices = @transform_0, window_bounds = array<i64: 2, 4, 256>}, {pipeline_mode = #tpu.pipeline_mode<synchronous>, transform_indices = @transform_1, window_bounds = array<i64: 8, 72>}, {pipeline_mode = #tpu.pipeline_mode<synchronous>, transform_indices = @transform_2, window_bounds = array<i64: 8, 1>}, {pipeline_mode = #tpu.pipeline_mode<synchronous>, transform_indices = @transform_3, window_bounds = array<i64: 32, 8>}, {pipeline_mode = #tpu.pipeline_mode<synchronous>, transform_indices = @transform_4, window_bounds = array<i64: 32, 1>}, {pipeline_mode = #tpu.pipeline_mode<synchronous>, transform_indices = @transform_5, window_bounds = array<i64: 72, 256>}, {pipeline_mode = #tpu.pipeline_mode<synchronous>, transform_indices = @transform_6, window_bounds = array<i64: 512, 2>}, {pipeline_mode = #tpu.pipeline_mode<synchronous>, transform_indices = @transform_7, window_bounds = array<i64: 32, 2>}]} {
    %cst = arith.constant 0.000000e+00 : f32
    %0 = vector.broadcast %cst : f32 to vector<8x512xf32>
    %c0 = arith.constant 0 : index
    %c0_0 = arith.constant 0 : index
    %1 = vector.load %arg9[%c0, %c0_0] : memref<8x512xf32, #tpu.memory_space<vmem>>, vector<8x512xf32>
    tpu.vector_store %arg9[%c0, %c0_0], %0 {strides = array<i32>} : memref<8x512xf32, #tpu.memory_space<vmem>>, vector<8x512xf32>,
    %c0_1 = arith.constant 0 : index
    %c0_2 = arith.constant 0 : index
    %c0_3 = arith.constant 0 : index
    %2 = vector.load %arg1[%c0_1, %c0_2, %c0_3] : memref<2x4x256xf32, #tpu.memory_space<vmem>>, vector<1x4x256xf32>
    %3 = vector.shape_cast %2 : vector<1x4x256xf32> to vector<4x256xf32>
    %c0_4 = arith.constant 0 : index
    %c128 = arith.constant 128 : index
    %4 = vector.load %arg9[%c0_4, %c128] : memref<8x512xf32, #tpu.memory_space<vmem>>, vector<4x256xf32>
    tpu.vector_store %arg9[%c0_4, %c128], %3 {strides = array<i32>} : memref<8x512xf32, #tpu.memory_space<vmem>>, vector<4x256xf32>,
    %c0_5 = arith.constant 0 : index
    %c0_6 = arith.constant 0 : index
    %5 = vector.load %arg9[%c0_5, %c0_6] : memref<8x512xf32, #tpu.memory_space<vmem>>, vector<8x512xf32>
    %6 = vector.extract_strided_slice %5 {offsets = [0, 111], sizes = [8, 256], strides = [1, 1]} : vector<8x512xf32> to vector<8x256xf32>
    %c0_7 = arith.constant 0 : index
    %c0_8 = arith.constant 0 : index
    %7 = vector.load %arg6[%c0_7, %c0_8] : memref<72x256xf32, #tpu.memory_space<vmem>>, vector<8x256xf32>
    %8 = arith.mulf %6, %7 : vector<8x256xf32>
    %c0_9 = arith.constant 0 : index
    %c0_10 = arith.constant 0 : index
    %9 = vector.load %arg10[%c0_9, %c0_10] : memref<72x512xf32, #tpu.memory_space<vmem>>, vector<8x256xf32>
    tpu.vector_store %arg10[%c0_9, %c0_10], %8 {strides = array<i32>} : memref<72x512xf32, #tpu.memory_space<vmem>>, vector<8x256xf32>,
    %10 = vector.extract_strided_slice %5 {offsets = [0, 112], sizes = [8, 256], strides = [1, 1]} : vector<8x512xf32> to vector<8x256xf32>
    %c8 = arith.constant 8 : index
    %c0_11 = arith.constant 0 : index
    %11 = vector.load %arg6[%c8, %c0_11] : memref<72x256xf32, #tpu.memory_space<vmem>>, vector<8x256xf32>
    %12 = arith.mulf %10, %11 : vector<8x256xf32>
    %c8_12 = arith.constant 8 : index
    %c0_13 = arith.constant 0 : index
    %13 = vector.load %arg10[%c8_12, %c0_13] : memref<72x512xf32, #tpu.memory_space<vmem>>, vector<8x256xf32>
    tpu.vector_store %arg10[%c8_12, %c0_13], %12 {strides = array<i32>} : memref<72x512xf32, #tpu.memory_space<vmem>>, vector<8x256xf32>,
    %14 = vector.extract_strided_slice %5 {offsets = [0, 113], sizes = [8, 256], strides = [1, 1]} : vector<8x512xf32> to vector<8x256xf32>
    %c16 = arith.constant 16 : index
    %c0_14 = arith.constant 0 : index
    %15 = vector.load %arg6[%c16, %c0_14] : memref<72x256xf32, #tpu.memory_space<vmem>>, vector<8x256xf32>
    %16 = arith.mulf %14, %15 : vector<8x256xf32>
    %c16_15 = arith.constant 16 : index
    %c0_16 = arith.constant 0 : index
    %17 = vector.load %arg10[%c16_15, %c0_16] : memref<72x512xf32, #tpu.memory_space<vmem>>, vector<8x256xf32>
    tpu.vector_store %arg10[%c16_15, %c0_16], %16 {strides = array<i32>} : memref<72x512xf32, #tpu.memory_space<vmem>>, vector<8x256xf32>,
    %18 = vector.extract_strided_slice %5 {offsets = [0, 127], sizes = [8, 256], strides = [1, 1]} : vector<8x512xf32> to vector<8x256xf32>
    %c24 = arith.constant 24 : index
    %c0_17 = arith.constant 0 : index
    %19 = vector.load %arg6[%c24, %c0_17] : memref<72x256xf32, #tpu.memory_space<vmem>>, vector<8x256xf32>
    %20 = arith.mulf %18, %19 : vector<8x256xf32>
    %c24_18 = arith.constant 24 : index
    %c0_19 = arith.constant 0 : index
    %21 = vector.load %arg10[%c24_18, %c0_19] : memref<72x512xf32, #tpu.memory_space<vmem>>, vector<8x256xf32>
    tpu.vector_store %arg10[%c24_18, %c0_19], %20 {strides = array<i32>} : memref<72x512xf32, #tpu.memory_space<vmem>>, vector<8x256xf32>,
    %22 = vector.extract_strided_slice %5 {offsets = [0, 128], sizes = [8, 256], strides = [1, 1]} : vector<8x512xf32> to vector<8x256xf32>
    %c32 = arith.constant 32 : index
    %c0_20 = arith.constant 0 : index
    %23 = vector.load %arg6[%c32, %c0_20] : memref<72x256xf32, #tpu.memory_space<vmem>>, vector<8x256xf32>
    %24 = arith.mulf %22, %23 : vector<8x256xf32>
    %c32_21 = arith.constant 32 : index
    %c0_22 = arith.constant 0 : index
    %25 = vector.load %arg10[%c32_21, %c0_22] : memref<72x512xf32, #tpu.memory_space<vmem>>, vector<8x256xf32>
    tpu.vector_store %arg10[%c32_21, %c0_22], %24 {strides = array<i32>} : memref<72x512xf32, #tpu.memory_space<vmem>>, vector<8x256xf32>,
    %26 = vector.extract_strided_slice %5 {offsets = [0, 129], sizes = [8, 256], strides = [1, 1]} : vector<8x512xf32> to vector<8x256xf32>
    %c40 = arith.constant 40 : index
    %c0_23 = arith.constant 0 : index
    %27 = vector.load %arg6[%c40, %c0_23] : memref<72x256xf32, #tpu.memory_space<vmem>>, vector<8x256xf32>
    %28 = arith.mulf %26, %27 : vector<8x256xf32>
    %c40_24 = arith.constant 40 : index
    %c0_25 = arith.constant 0 : index
    %29 = vector.load %arg10[%c40_24, %c0_25] : memref<72x512xf32, #tpu.memory_space<vmem>>, vector<8x256xf32>
    tpu.vector_store %arg10[%c40_24, %c0_25], %28 {strides = array<i32>} : memref<72x512xf32, #tpu.memory_space<vmem>>, vector<8x256xf32>,
    %30 = vector.extract_strided_slice %5 {offsets = [0, 143], sizes = [8, 256], strides = [1, 1]} : vector<8x512xf32> to vector<8x256xf32>
    %c48 = arith.constant 48 : index
    %c0_26 = arith.constant 0 : index
    %31 = vector.load %arg6[%c48, %c0_26] : memref<72x256xf32, #tpu.memory_space<vmem>>, vector<8x256xf32>
    %32 = arith.mulf %30, %31 : vector<8x256xf32>
    %c48_27 = arith.constant 48 : index
    %c0_28 = arith.constant 0 : index
    %33 = vector.load %arg10[%c48_27, %c0_28] : memref<72x512xf32, #tpu.memory_space<vmem>>, vector<8x256xf32>
    tpu.vector_store %arg10[%c48_27, %c0_28], %32 {strides = array<i32>} : memref<72x512xf32, #tpu.memory_space<vmem>>, vector<8x256xf32>,
    %34 = vector.extract_strided_slice %5 {offsets = [0, 144], sizes = [8, 256], strides = [1, 1]} : vector<8x512xf32> to vector<8x256xf32>
    %c56 = arith.constant 56 : index
    %c0_29 = arith.constant 0 : index
    %35 = vector.load %arg6[%c56, %c0_29] : memref<72x256xf32, #tpu.memory_space<vmem>>, vector<8x256xf32>
    %36 = arith.mulf %34, %35 : vector<8x256xf32>
    %c56_30 = arith.constant 56 : index
    %c0_31 = arith.constant 0 : index
    %37 = vector.load %arg10[%c56_30, %c0_31] : memref<72x512xf32, #tpu.memory_space<vmem>>, vector<8x256xf32>
    tpu.vector_store %arg10[%c56_30, %c0_31], %36 {strides = array<i32>} : memref<72x512xf32, #tpu.memory_space<vmem>>, vector<8x256xf32>,
    %38 = vector.extract_strided_slice %5 {offsets = [0, 145], sizes = [8, 256], strides = [1, 1]} : vector<8x512xf32> to vector<8x256xf32>
    %c64 = arith.constant 64 : index
    %c0_32 = arith.constant 0 : index
    %39 = vector.load %arg6[%c64, %c0_32] : memref<72x256xf32, #tpu.memory_space<vmem>>, vector<8x256xf32>
    %40 = arith.mulf %38, %39 : vector<8x256xf32>
    %c64_33 = arith.constant 64 : index
    %c0_34 = arith.constant 0 : index
    %41 = vector.load %arg10[%c64_33, %c0_34] : memref<72x512xf32, #tpu.memory_space<vmem>>, vector<8x256xf32>
    tpu.vector_store %arg10[%c64_33, %c0_34], %40 {strides = array<i32>} : memref<72x512xf32, #tpu.memory_space<vmem>>, vector<8x256xf32>,
    %c1 = arith.constant 1 : index
    %c0_35 = arith.constant 0 : index
    %c0_36 = arith.constant 0 : index
    %42 = vector.load %arg1[%c1, %c0_35, %c0_36] : memref<2x4x256xf32, #tpu.memory_space<vmem>>, vector<1x4x256xf32>
    %43 = vector.shape_cast %42 : vector<1x4x256xf32> to vector<4x256xf32>
    %c0_37 = arith.constant 0 : index
    %c128_38 = arith.constant 128 : index
    %44 = vector.load %arg9[%c0_37, %c128_38] : memref<8x512xf32, #tpu.memory_space<vmem>>, vector<4x256xf32>
    tpu.vector_store %arg9[%c0_37, %c128_38], %43 {strides = array<i32>} : memref<8x512xf32, #tpu.memory_space<vmem>>, vector<4x256xf32>,
    %c0_39 = arith.constant 0 : index
    %c0_40 = arith.constant 0 : index
    %45 = vector.load %arg9[%c0_39, %c0_40] : memref<8x512xf32, #tpu.memory_space<vmem>>, vector<8x512xf32>
    %46 = vector.extract_strided_slice %45 {offsets = [0, 111], sizes = [8, 256], strides = [1, 1]} : vector<8x512xf32> to vector<8x256xf32>
    %c0_41 = arith.constant 0 : index
    %c0_42 = arith.constant 0 : index
    %47 = vector.load %arg6[%c0_41, %c0_42] : memref<72x256xf32, #tpu.memory_space<vmem>>, vector<8x256xf32>
    %48 = arith.mulf %46, %47 : vector<8x256xf32>
    %c0_43 = arith.constant 0 : index
    %c256 = arith.constant 256 : index
    %49 = vector.load %arg10[%c0_43, %c256] : memref<72x512xf32, #tpu.memory_space<vmem>>, vector<8x256xf32>
    tpu.vector_store %arg10[%c0_43, %c256], %48 {strides = array<i32>} : memref<72x512xf32, #tpu.memory_space<vmem>>, vector<8x256xf32>,
    %50 = vector.extract_strided_slice %45 {offsets = [0, 112], sizes = [8, 256], strides = [1, 1]} : vector<8x512xf32> to vector<8x256xf32>
    %c8_44 = arith.constant 8 : index
    %c0_45 = arith.constant 0 : index
    %51 = vector.load %arg6[%c8_44, %c0_45] : memref<72x256xf32, #tpu.memory_space<vmem>>, vector<8x256xf32>
    %52 = arith.mulf %50, %51 : vector<8x256xf32>
    %c8_46 = arith.constant 8 : index
    %c256_47 = arith.constant 256 : index
    %53 = vector.load %arg10[%c8_46, %c256_47] : memref<72x512xf32, #tpu.memory_space<vmem>>, vector<8x256xf32>
    tpu.vector_store %arg10[%c8_46, %c256_47], %52 {strides = array<i32>} : memref<72x512xf32, #tpu.memory_space<vmem>>, vector<8x256xf32>,
    %54 = vector.extract_strided_slice %45 {offsets = [0, 113], sizes = [8, 256], strides = [1, 1]} : vector<8x512xf32> to vector<8x256xf32>
    %c16_48 = arith.constant 16 : index
    %c0_49 = arith.constant 0 : index
    %55 = vector.load %arg6[%c16_48, %c0_49] : memref<72x256xf32, #tpu.memory_space<vmem>>, vector<8x256xf32>
    %56 = arith.mulf %54, %55 : vector<8x256xf32>
    %c16_50 = arith.constant 16 : index
    %c256_51 = arith.constant 256 : index
    %57 = vector.load %arg10[%c16_50, %c256_51] : memref<72x512xf32, #tpu.memory_space<vmem>>, vector<8x256xf32>
    tpu.vector_store %arg10[%c16_50, %c256_51], %56 {strides = array<i32>} : memref<72x512xf32, #tpu.memory_space<vmem>>, vector<8x256xf32>,
    %58 = vector.extract_strided_slice %45 {offsets = [0, 127], sizes = [8, 256], strides = [1, 1]} : vector<8x512xf32> to vector<8x256xf32>
    %c24_52 = arith.constant 24 : index
    %c0_53 = arith.constant 0 : index
    %59 = vector.load %arg6[%c24_52, %c0_53] : memref<72x256xf32, #tpu.memory_space<vmem>>, vector<8x256xf32>
    %60 = arith.mulf %58, %59 : vector<8x256xf32>
    %c24_54 = arith.constant 24 : index
    %c256_55 = arith.constant 256 : index
    %61 = vector.load %arg10[%c24_54, %c256_55] : memref<72x512xf32, #tpu.memory_space<vmem>>, vector<8x256xf32>
    tpu.vector_store %arg10[%c24_54, %c256_55], %60 {strides = array<i32>} : memref<72x512xf32, #tpu.memory_space<vmem>>, vector<8x256xf32>,
    %62 = vector.extract_strided_slice %45 {offsets = [0, 128], sizes = [8, 256], strides = [1, 1]} : vector<8x512xf32> to vector<8x256xf32>
    %c32_56 = arith.constant 32 : index
    %c0_57 = arith.constant 0 : index
    %63 = vector.load %arg6[%c32_56, %c0_57] : memref<72x256xf32, #tpu.memory_space<vmem>>, vector<8x256xf32>
    %64 = arith.mulf %62, %63 : vector<8x256xf32>
    %c32_58 = arith.constant 32 : index
    %c256_59 = arith.constant 256 : index
    %65 = vector.load %arg10[%c32_58, %c256_59] : memref<72x512xf32, #tpu.memory_space<vmem>>, vector<8x256xf32>
    tpu.vector_store %arg10[%c32_58, %c256_59], %64 {strides = array<i32>} : memref<72x512xf32, #tpu.memory_space<vmem>>, vector<8x256xf32>,
    %66 = vector.extract_strided_slice %45 {offsets = [0, 129], sizes = [8, 256], strides = [1, 1]} : vector<8x512xf32> to vector<8x256xf32>
    %c40_60 = arith.constant 40 : index
    %c0_61 = arith.constant 0 : index
    %67 = vector.load %arg6[%c40_60, %c0_61] : memref<72x256xf32, #tpu.memory_space<vmem>>, vector<8x256xf32>
    %68 = arith.mulf %66, %67 : vector<8x256xf32>
    %c40_62 = arith.constant 40 : index
    %c256_63 = arith.constant 256 : index
    %69 = vector.load %arg10[%c40_62, %c256_63] : memref<72x512xf32, #tpu.memory_space<vmem>>, vector<8x256xf32>
    tpu.vector_store %arg10[%c40_62, %c256_63], %68 {strides = array<i32>} : memref<72x512xf32, #tpu.memory_space<vmem>>, vector<8x256xf32>,
    %70 = vector.extract_strided_slice %45 {offsets = [0, 143], sizes = [8, 256], strides = [1, 1]} : vector<8x512xf32> to vector<8x256xf32>
    %c48_64 = arith.constant 48 : index
    %c0_65 = arith.constant 0 : index
    %71 = vector.load %arg6[%c48_64, %c0_65] : memref<72x256xf32, #tpu.memory_space<vmem>>, vector<8x256xf32>
    %72 = arith.mulf %70, %71 : vector<8x256xf32>
    %c48_66 = arith.constant 48 : index
    %c256_67 = arith.constant 256 : index
    %73 = vector.load %arg10[%c48_66, %c256_67] : memref<72x512xf32, #tpu.memory_space<vmem>>, vector<8x256xf32>
    tpu.vector_store %arg10[%c48_66, %c256_67], %72 {strides = array<i32>} : memref<72x512xf32, #tpu.memory_space<vmem>>, vector<8x256xf32>,
    %74 = vector.extract_strided_slice %45 {offsets = [0, 144], sizes = [8, 256], strides = [1, 1]} : vector<8x512xf32> to vector<8x256xf32>
    %c56_68 = arith.constant 56 : index
    %c0_69 = arith.constant 0 : index
    %75 = vector.load %arg6[%c56_68, %c0_69] : memref<72x256xf32, #tpu.memory_space<vmem>>, vector<8x256xf32>
    %76 = arith.mulf %74, %75 : vector<8x256xf32>
    %c56_70 = arith.constant 56 : index
    %c256_71 = arith.constant 256 : index
    %77 = vector.load %arg10[%c56_70, %c256_71] : memref<72x512xf32, #tpu.memory_space<vmem>>, vector<8x256xf32>
    tpu.vector_store %arg10[%c56_70, %c256_71], %76 {strides = array<i32>} : memref<72x512xf32, #tpu.memory_space<vmem>>, vector<8x256xf32>,
    %78 = vector.extract_strided_slice %45 {offsets = [0, 145], sizes = [8, 256], strides = [1, 1]} : vector<8x512xf32> to vector<8x256xf32>
    %c64_72 = arith.constant 64 : index
    %c0_73 = arith.constant 0 : index
    %79 = vector.load %arg6[%c64_72, %c0_73] : memref<72x256xf32, #tpu.memory_space<vmem>>, vector<8x256xf32>
    %80 = arith.mulf %78, %79 : vector<8x256xf32>
    %c64_74 = arith.constant 64 : index
    %c256_75 = arith.constant 256 : index
    %81 = vector.load %arg10[%c64_74, %c256_75] : memref<72x512xf32, #tpu.memory_space<vmem>>, vector<8x256xf32>
    tpu.vector_store %arg10[%c64_74, %c256_75], %80 {strides = array<i32>} : memref<72x512xf32, #tpu.memory_space<vmem>>, vector<8x256xf32>,
    %c0_76 = arith.constant 0 : index
    %c0_77 = arith.constant 0 : index
    %82 = vector.load %arg2[%c0_76, %c0_77] : memref<8x72xf32, #tpu.memory_space<vmem>>, vector<8x72xf32>
    %c0_78 = arith.constant 0 : index
    %c0_79 = arith.constant 0 : index
    %83 = vector.load %arg10[%c0_78, %c0_79] : memref<72x512xf32, #tpu.memory_space<vmem>>, vector<72x512xf32>
    %cst_80 = arith.constant dense<0.000000e+00> : vector<8x512xf32>
    %84 = tpu.matmul %82, %83, %cst_80 {dimension_numbers = #tpu.dot_dimension_numbers<[1], [0], [0], [1], [0, 0, 1, 1], [], []>} : vector<8x72xf32>, vector<72x512xf32>, vector<8x512xf32> -> vector<8x512xf32>
    %c0_81 = arith.constant 0 : index
    %c0_82 = arith.constant 0 : index
    %85 = vector.load %arg3[%c0_81, %c0_82] : memref<8x1xf32, #tpu.memory_space<vmem>>, vector<8x1xf32>
    %86 = vector.broadcast %85 : vector<8x1xf32> to vector<8x512xf32>
    %87 = arith.addf %84, %86 : vector<8x512xf32>
    %cst_83 = arith.constant 0.000000e+00 : f32
    %88 = vector.broadcast %cst_83 : f32 to vector<8x512xf32>
    %89 = arith.maximumf %87, %88 : vector<8x512xf32>
    %c0_84 = arith.constant 0 : index
    %c0_85 = arith.constant 0 : index
    %90 = vector.load %arg7[%c0_84, %c0_85] : memref<512x2xf32, #tpu.memory_space<vmem>>, vector<512x2xf32>
    %cst_86 = arith.constant dense<0.000000e+00> : vector<8x2xf32>
    %91 = tpu.matmul %89, %90, %cst_86 {dimension_numbers = #tpu.dot_dimension_numbers<[1], [0], [0], [1], [0, 0, 1, 1], [], []>} : vector<8x512xf32>, vector<512x2xf32>, vector<8x2xf32> -> vector<8x2xf32>
    %c0_87 = arith.constant 0 : index
    %c0_88 = arith.constant 0 : index
    %92 = vector.load %arg4[%c0_87, %c0_88] : memref<32x8xf32, #tpu.memory_space<vmem>>, vector<32x8xf32>
    %cst_89 = arith.constant dense<0.000000e+00> : vector<32x2xf32>
    %93 = tpu.matmul %92, %91, %cst_89 {dimension_numbers = #tpu.dot_dimension_numbers<[1], [0], [0], [1], [0, 0, 1, 1], [], []>} : vector<32x8xf32>, vector<8x2xf32>, vector<32x2xf32> -> vector<32x2xf32>
    %c0_90 = arith.constant 0 : index
    %c0_91 = arith.constant 0 : index
    %94 = vector.load %arg5[%c0_90, %c0_91] : memref<32x1xf32, #tpu.memory_space<vmem>>, vector<32x1xf32>
    %95 = vector.broadcast %94 : vector<32x1xf32> to vector<32x2xf32>
    %96 = arith.addf %93, %95 : vector<32x2xf32>
    %c0_92 = arith.constant 0 : index
    %c0_93 = arith.constant 0 : index
    %97 = vector.load %arg8[%c0_92, %c0_93] : memref<32x2xf32, #tpu.memory_space<vmem>>, vector<32x2xf32>
    tpu.vector_store %arg8[%c0_92, %c0_93], %96 {strides = array<i32>} : memref<32x2xf32, #tpu.memory_space<vmem>>, vector<32x2xf32>,
    return
  }
  func.func @transform_0(%arg0: i32) -> (i32, i32, i32) {
    %c0_i32 = arith.constant 0 : i32
    %c0_i32_0 = arith.constant 0 : i32
    %c0_i32_1 = arith.constant 0 : i32
    %c0_i32_2 = arith.constant 0 : i32
    return %c0_i32, %c0_i32_0, %c0_i32_1 : i32, i32, i32
  }
  func.func @transform_1(%arg0: i32) -> (i32, i32) {
    %c0_i32 = arith.constant 0 : i32
    %c0_i32_0 = arith.constant 0 : i32
    %c0_i32_1 = arith.constant 0 : i32
    return %c0_i32, %c0_i32_0 : i32, i32
  }
  func.func @transform_2(%arg0: i32) -> (i32, i32) {
    %c0_i32 = arith.constant 0 : i32
    %c0_i32_0 = arith.constant 0 : i32
    %c0_i32_1 = arith.constant 0 : i32
    return %c0_i32, %c0_i32_0 : i32, i32
  }
  func.func @transform_3(%arg0: i32) -> (i32, i32) {
    %c0_i32 = arith.constant 0 : i32
    %c0_i32_0 = arith.constant 0 : i32
    %c0_i32_1 = arith.constant 0 : i32
    return %c0_i32, %c0_i32_0 : i32, i32
  }
  func.func @transform_4(%arg0: i32) -> (i32, i32) {
    %c0_i32 = arith.constant 0 : i32
    %c0_i32_0 = arith.constant 0 : i32
    %c0_i32_1 = arith.constant 0 : i32
    return %c0_i32, %c0_i32_0 : i32, i32
  }
  func.func @transform_5(%arg0: i32) -> (i32, i32) {
    %c0_i32 = arith.constant 0 : i32
    %c0_i32_0 = arith.constant 0 : i32
    %c0_i32_1 = arith.constant 0 : i32
    return %c0_i32, %c0_i32_0 : i32, i32
  }
  func.func @transform_6(%arg0: i32) -> (i32, i32) {
    %c0_i32 = arith.constant 0 : i32
    %c0_i32_0 = arith.constant 0 : i32
    %c0_i32_1 = arith.constant 0 : i32
    return %c0_i32, %c0_i32_0 : i32, i32
  }
  func.func @transform_7(%arg0: i32) -> (i32, i32) {
    %c0_i32 = arith.constant 0 : i32
    %c0_i32_0 = arith.constant 0 : i32
    %c0_i32_1 = arith.constant 0 : i32
    return %c0_i32, %c0_i32_0 : i32, i32
  }
}

</mosaic_0001>

<llo_original>
// kernel: tpu_custom_call.1
$region0: #{tpu_custom_call.1}
  #allocation0 [shape = 'u32[]', space=smem, size = 0x4, offset = 0x4, fixed_abs, tag = 'smem constant byte address 0x4 - core index']
  #allocation1 [shape = 'u32[144,128]{1,0:T(1,128)}', space=vmem, size = 0x12000, scoped, tag = 'internal scratch']
  #allocation2 [shape = 'f32[8,512]{1,0:T(8,128)}', space=vmem, size = 0x4000, scoped, tag = 'scratch operand']
  #allocation3 [shape = 'f32[72,512]{1,0:T(8,128)}', space=vmem, size = 0x24000, scoped, tag = 'scratch operand']
  %s0 = inlined_call_operand.vmem [shape: f32[2,4,256], index: 0, kind: input, shape index: {}]
  %s1 = inlined_call_operand.vmem [shape: f32[8,72], index: 1, kind: input, shape index: {}]
  %s2 = inlined_call_operand.vmem [shape: f32[8,1], index: 2, kind: input, shape index: {}]
  %s3 = inlined_call_operand.vmem [shape: f32[32,8], index: 3, kind: input, shape index: {}]
  %s4 = inlined_call_operand.vmem [shape: f32[32,1], index: 4, kind: input, shape index: {}]
  %s5 = inlined_call_operand.vmem [shape: f32[72,256], index: 5, kind: input, shape index: {}]
  %s6 = inlined_call_operand.vmem [shape: f32[512,2], index: 6, kind: input, shape index: {}]
  %s7 = inlined_call_operand.vmem [shape: f32[32,2], index: 7, kind: output, shape index: {}]
  %s8 = sld [smem:[#allocation0]]
  $region38: #{tpu_custom_call.1} parent=0
    _
  %s10 = ssub.s32 1, %s8
  %s11 = scalar_select 0, %s10, %s8
  // Predicated region
  $region2: #{tpu_custom_call.1} parent=0 // pred_check
    _
  $region3: #{tpu_custom_call.1} parent=0 // pred_check_branch
    %13 = sbr.rel (0) target = $region5
  $region4: #{tpu_custom_call.1} parent=0 // pred_region
    _
  $region5: #{tpu_custom_call.1} parent=0 // pred_fallthru
    _
  // Predicated region
  $region6: #{tpu_custom_call.1} parent=0 // pred_check
    _
  $region7: #{tpu_custom_call.1} parent=0 // pred_check_branch
    %15 = sbr.rel (0) target = $region9
  $region8: #{tpu_custom_call.1} parent=0 // pred_region
    _
  $region9: #{tpu_custom_call.1} parent=0 // pred_fallthru
    _
  // Predicated region
  $region10: #{tpu_custom_call.1} parent=0 // pred_check
    _
  $region11: #{tpu_custom_call.1} parent=0 // pred_check_branch
    %17 = sbr.rel (0) target = $region13
  $region12: #{tpu_custom_call.1} parent=0 // pred_region
    _
  $region13: #{tpu_custom_call.1} parent=0 // pred_fallthru
    _
  // Predicated region
  $region14: #{tpu_custom_call.1} parent=0 // pred_check
    _
  $region15: #{tpu_custom_call.1} parent=0 // pred_check_branch
    %19 = sbr.rel (0) target = $region17
  $region16: #{tpu_custom_call.1} parent=0 // pred_region
    _
  $region17: #{tpu_custom_call.1} parent=0 // pred_fallthru
    _
  // Predicated region
  $region18: #{tpu_custom_call.1} parent=0 // pred_check
    _
  $region19: #{tpu_custom_call.1} parent=0 // pred_check_branch
    %21 = sbr.rel (0) target = $region21
  $region20: #{tpu_custom_call.1} parent=0 // pred_region
    _
  $region21: #{tpu_custom_call.1} parent=0 // pred_fallthru
    _
  // Predicated region
  $region22: #{tpu_custom_call.1} parent=0 // pred_check
    _
  $region23: #{tpu_custom_call.1} parent=0 // pred_check_branch
    %23 = sbr.rel (0) target = $region25
  $region24: #{tpu_custom_call.1} parent=0 // pred_region
    _
  $region25: #{tpu_custom_call.1} parent=0 // pred_fallthru
    _
  // Predicated region
  $region26: #{tpu_custom_call.1} parent=0 // pred_check
    _
  $region27: #{tpu_custom_call.1} parent=0 // pred_check_branch
    %25 = sbr.rel (0) target = $region29
  $region28: #{tpu_custom_call.1} parent=0 // pred_region
    _
  $region29: #{tpu_custom_call.1} parent=0 // pred_fallthru
    _
  %26 = vst [vmem:[#allocation2] sm:$0xff] 0.0
  %27 = vst [vmem:[#allocation2 + $0x8] sm:$0xff] 0.0
  %28 = vst [vmem:[#allocation2 + $0x10] sm:$0xff] 0.0
  %29 = vst [vmem:[#allocation2 + $0x18] sm:$0xff] 0.0
  %v30 = vld [vmem:[%s0] sm:$0xff]
  %v32 = vcombine.high %v30, %v30
  %34 = vst [vmem:[#allocation2 + $0x8] sm:$0xf] %v30
  %35 = vst [vmem:[#allocation2 + $0x10] sm:$0xf] %v32
  %v36 = vld [vmem:[#allocation2] sm:$0xff]
  %v37 = vld [vmem:[#allocation2 + $0x8] sm:$0xff]
  %v38 = vld [vmem:[#allocation2 + $0x10] sm:$0xff]
  %v39 = vld [vmem:[#allocation2 + $0x18] sm:$0xff]
  %v40 = vld [vmem:[%s5] sm:$0xff]
  %v41 = vld [vmem:[%s5 + $0x8] sm:$0xff]
  %44 = vrot.lane.b32.xlu0 %v40, 111
  %v45 = vpop.permute.xlu0 %44
  %46 = vrot.lane.b32.xlu0 %v41, 111
  %v47 = vpop.permute.xlu0 %46
  %vm48 = vcmask 908288
  %v49 = vsel %vm48, %v45, %v47
  %v53 = vmul.f32 %v36, %v45
  %v54 = vmul.f32 %v37, %v49
  %v55 = vmul.f32 %v38, %v47
  %59 = vrot.lane.b32.xlu0 %v53, 17
  %v60 = vpop.permute.xlu0 %59
  %61 = vrot.lane.b32.xlu0 %v54, 17
  %v62 = vpop.permute.xlu0 %61
  %63 = vrot.lane.b32.xlu0 %v55, 17
  %v64 = vpop.permute.xlu0 %63
  %vm65 = vcmask 138240
  %v66 = vsel %vm65, %v60, %v62
  %v67 = vsel %vm65, %v62, %v64
  %70 = vst [vmem:[#allocation3] sm:$0xff] %v66
  %71 = vst [vmem:[#allocation3 + $0x8] sm:$0xff] %v67
  %v72 = vld [vmem:[%s5 + $0x10] sm:$0xff]
  %v73 = vld [vmem:[%s5 + $0x18] sm:$0xff]
  %76 = vrot.lane.b32.xlu0 %v72, 112
  %v77 = vpop.permute.xlu0 %76
  %78 = vrot.lane.b32.xlu0 %v73, 112
  %v79 = vpop.permute.xlu0 %78
  %vm80 = vcmask 916480
  %v81 = vsel %vm80, %v77, %v79
  %v85 = vmul.f32 %v36, %v77
  %v86 = vmul.f32 %v37, %v81
  %v87 = vmul.f32 %v38, %v79
  %91 = vrot.lane.b32.xlu0 %v85, 16
  %v92 = vpop.permute.xlu0 %91
  %93 = vrot.lane.b32.xlu0 %v86, 16
  %v94 = vpop.permute.xlu0 %93
  %95 = vrot.lane.b32.xlu0 %v87, 16
  %v96 = vpop.permute.xlu0 %95
  %vm97 = vcmask 130048
  %v98 = vsel %vm97, %v92, %v94
  %v99 = vsel %vm97, %v94, %v96
  %102 = vst [vmem:[#allocation3 + $0x20] sm:$0xff] %v98
  %103 = vst [vmem:[#allocation3 + $0x28] sm:$0xff] %v99
  %v104 = vld [vmem:[%s5 + $0x20] sm:$0xff]
  %v105 = vld [vmem:[%s5 + $0x28] sm:$0xff]
  %108 = vrot.lane.b32.xlu0 %v104, 113
  %v109 = vpop.permute.xlu0 %108
  %110 = vrot.lane.b32.xlu0 %v105, 113
  %v111 = vpop.permute.xlu0 %110
  %vm112 = vcmask 924672
  %v113 = vsel %vm112, %v109, %v111
  %v117 = vmul.f32 %v36, %v109
  %v118 = vmul.f32 %v37, %v113
  %v119 = vmul.f32 %v38, %v111
  %123 = vrot.lane.b32.xlu0 %v117, 15
  %v124 = vpop.permute.xlu0 %123
  %125 = vrot.lane.b32.xlu0 %v118, 15
  %v126 = vpop.permute.xlu0 %125
  %127 = vrot.lane.b32.xlu0 %v119, 15
  %v128 = vpop.permute.xlu0 %127
  %vm129 = vcmask 121856
  %v130 = vsel %vm129, %v124, %v126
  %v131 = vsel %vm129, %v126, %v128
  %134 = vst [vmem:[#allocation3 + $0x40] sm:$0xff] %v130
  %135 = vst [vmem:[#allocation3 + $0x48] sm:$0xff] %v131
  %v136 = vld [vmem:[%s5 + $0x30] sm:$0xff]
  %v137 = vld [vmem:[%s5 + $0x38] sm:$0xff]
  %140 = vrot.lane.b32.xlu0 %v136, 127
  %v141 = vpop.permute.xlu0 %140
  %142 = vrot.lane.b32.xlu0 %v137, 127
  %v143 = vpop.permute.xlu0 %142
  %vm144 = vcmask 1039360
  %v145 = vsel %vm144, %v141, %v143
  %v149 = vmul.f32 %v36, %v141
  %v150 = vmul.f32 %v37, %v145
  %v151 = vmul.f32 %v38, %v143
  %155 = vrot.lane.b32.xlu0 %v149, 1
  %v156 = vpop.permute.xlu0 %155
  %157 = vrot.lane.b32.xlu0 %v150, 1
  %v158 = vpop.permute.xlu0 %157
  %159 = vrot.lane.b32.xlu0 %v151, 1
  %v160 = vpop.permute.xlu0 %159
  %vm161 = vcmask 7168
  %v162 = vsel %vm161, %v156, %v158
  %v163 = vsel %vm161, %v158, %v160
  %166 = vst [vmem:[#allocation3 + $0x60] sm:$0xff] %v162
  %167 = vst [vmem:[#allocation3 + $0x68] sm:$0xff] %v163
  %v168 = vld [vmem:[%s5 + $0x40] sm:$0xff]
  %v169 = vld [vmem:[%s5 + $0x48] sm:$0xff]
  %v170 = vmul.f32 %v37, %v168
  %v171 = vmul.f32 %v38, %v169
  %172 = vst [vmem:[#allocation3 + $0x80] sm:$0xff] %v170
  %173 = vst [vmem:[#allocation3 + $0x88] sm:$0xff] %v171
  %v174 = vld [vmem:[%s5 + $0x50] sm:$0xff]
  %v175 = vld [vmem:[%s5 + $0x58] sm:$0xff]
  %178 = vrot.lane.b32.xlu0 %v174, 1
  %v179 = vpop.permute.xlu0 %178
  %180 = vrot.lane.b32.xlu0 %v175, 1
  %v181 = vpop.permute.xlu0 %180
  %v182 = vsel %vm161, %v179, %v181
  %v186 = vmul.f32 %v37, %v179
  %v187 = vmul.f32 %v38, %v182
  %v188 = vmul.f32 %v39, %v181
  %192 = vrot.lane.b32.xlu0 %v186, 127
  %v193 = vpop.permute.xlu0 %192
  %194 = vrot.lane.b32.xlu0 %v187, 127
  %v195 = vpop.permute.xlu0 %194
  %196 = vrot.lane.b32.xlu0 %v188, 127
  %v197 = vpop.permute.xlu0 %196
  %v198 = vsel %vm144, %v193, %v195
  %v199 = vsel %vm144, %v195, %v197
  %202 = vst [vmem:[#allocation3 + $0xa0] sm:$0xff] %v198
  %203 = vst [vmem:[#allocation3 + $0xa8] sm:$0xff] %v199
  %v204 = vld [vmem:[%s5 + $0x60] sm:$0xff]
  %v205 = vld [vmem:[%s5 + $0x68] sm:$0xff]
  %208 = vrot.lane.b32.xlu0 %v204, 15
  %v209 = vpop.permute.xlu0 %208
  %210 = vrot.lane.b32.xlu0 %v205, 15
  %v211 = vpop.permute.xlu0 %210
  %v212 = vsel %vm129, %v209, %v211
  %v216 = vmul.f32 %v37, %v209
  %v217 = vmul.f32 %v38, %v212
  %v218 = vmul.f32 %v39, %v211
  %222 = vrot.lane.b32.xlu0 %v216, 113
  %v223 = vpop.permute.xlu0 %222
  %224 = vrot.lane.b32.xlu0 %v217, 113
  %v225 = vpop.permute.xlu0 %224
  %226 = vrot.lane.b32.xlu0 %v218, 113
  %v227 = vpop.permute.xlu0 %226
  %v228 = vsel %vm112, %v223, %v225
  %v229 = vsel %vm112, %v225, %v227
  %232 = vst [vmem:[#allocation3 + $0xc0] sm:$0xff] %v228
  %233 = vst [vmem:[#allocation3 + $0xc8] sm:$0xff] %v229
  %v234 = vld [vmem:[%s5 + $0x70] sm:$0xff]
  %v235 = vld [vmem:[%s5 + $0x78] sm:$0xff]
  %238 = vrot.lane.b32.xlu0 %v234, 16
  %v239 = vpop.permute.xlu0 %238
  %240 = vrot.lane.b32.xlu0 %v235, 16
  %v241 = vpop.permute.xlu0 %240
  %v242 = vsel %vm97, %v239, %v241
  %v246 = vmul.f32 %v37, %v239
  %v247 = vmul.f32 %v38, %v242
  %v248 = vmul.f32 %v39, %v241
  %252 = vrot.lane.b32.xlu0 %v246, 112
  %v253 = vpop.permute.xlu0 %252
  %254 = vrot.lane.b32.xlu0 %v247, 112
  %v255 = vpop.permute.xlu0 %254
  %256 = vrot.lane.b32.xlu0 %v248, 112
  %v257 = vpop.permute.xlu0 %256
  %v258 = vsel %vm80, %v253, %v255
  %v259 = vsel %vm80, %v255, %v257
  %262 = vst [vmem:[#allocation3 + $0xe0] sm:$0xff] %v258
  %263 = vst [vmem:[#allocation3 + $0xe8] sm:$0xff] %v259
  %v264 = vld [vmem:[%s5 + $0x80] sm:$0xff]
  %v265 = vld [vmem:[%s5 + $0x88] sm:$0xff]
  %268 = vrot.lane.b32.xlu0 %v264, 17
  %v269 = vpop.permute.xlu0 %268
  %270 = vrot.lane.b32.xlu0 %v265, 17
  %v271 = vpop.permute.xlu0 %270
  %v272 = vsel %vm65, %v269, %v271
  %v276 = vmul.f32 %v37, %v269
  %v277 = vmul.f32 %v38, %v272
  %v278 = vmul.f32 %v39, %v271
  %282 = vrot.lane.b32.xlu0 %v276, 111
  %v283 = vpop.permute.xlu0 %282
  %284 = vrot.lane.b32.xlu0 %v277, 111
  %v285 = vpop.permute.xlu0 %284
  %286 = vrot.lane.b32.xlu0 %v278, 111
  %v287 = vpop.permute.xlu0 %286
  %v288 = vsel %vm48, %v283, %v285
  %v289 = vsel %vm48, %v285, %v287
  %292 = vst [vmem:[#allocation3 + $0x100] sm:$0xff] %v288
  %293 = vst [vmem:[#allocation3 + $0x108] sm:$0xff] %v289
  %s294 = scalar_lea.vmem %s0, 8
  %v295 = vld [vmem:[%s294] sm:$0xff]
  %v297 = vcombine.high %v295, %v295
  %299 = vst [vmem:[#allocation2 + $0x8] sm:$0xf] %v295
  %300 = vst [vmem:[#allocation2 + $0x10] sm:$0xf] %v297
  %v301 = vld [vmem:[#allocation2] sm:$0xff]
  %v302 = vld [vmem:[#allocation2 + $0x8] sm:$0xff]
  %v303 = vld [vmem:[#allocation2 + $0x10] sm:$0xff]
  %v304 = vld [vmem:[#allocation2 + $0x18] sm:$0xff]
  %v305 = vld [vmem:[%s5] sm:$0xff]
  %v306 = vld [vmem:[%s5 + $0x8] sm:$0xff]
  %309 = vrot.lane.b32.xlu0 %v305, 111
  %v310 = vpop.permute.xlu0 %309
  %311 = vrot.lane.b32.xlu0 %v306, 111
  %v312 = vpop.permute.xlu0 %311
  %v313 = vsel %vm48, %v310, %v312
  %v317 = vmul.f32 %v301, %v310
  %v318 = vmul.f32 %v302, %v313
  %v319 = vmul.f32 %v303, %v312
  %323 = vrot.lane.b32.xlu0 %v317, 17
  %v324 = vpop.permute.xlu0 %323
  %325 = vrot.lane.b32.xlu0 %v318, 17
  %v326 = vpop.permute.xlu0 %325
  %327 = vrot.lane.b32.xlu0 %v319, 17
  %v328 = vpop.permute.xlu0 %327
  %v329 = vsel %vm65, %v324, %v326
  %v330 = vsel %vm65, %v326, %v328
  %333 = vst [vmem:[#allocation3 + $0x10] sm:$0xff] %v329
  %334 = vst [vmem:[#allocation3 + $0x18] sm:$0xff] %v330
  %v335 = vld [vmem:[%s5 + $0x10] sm:$0xff]
  %v336 = vld [vmem:[%s5 + $0x18] sm:$0xff]
  %339 = vrot.lane.b32.xlu0 %v335, 112
  %v340 = vpop.permute.xlu0 %339
  %341 = vrot.lane.b32.xlu0 %v336, 112
  %v342 = vpop.permute.xlu0 %341
  %v343 = vsel %vm80, %v340, %v342
  %v347 = vmul.f32 %v301, %v340
  %v348 = vmul.f32 %v302, %v343
  %v349 = vmul.f32 %v303, %v342
  %353 = vrot.lane.b32.xlu0 %v347, 16
  %v354 = vpop.permute.xlu0 %353
  %355 = vrot.lane.b32.xlu0 %v348, 16
  %v356 = vpop.permute.xlu0 %355
  %357 = vrot.lane.b32.xlu0 %v349, 16
  %v358 = vpop.permute.xlu0 %357
  %v359 = vsel %vm97, %v354, %v356
  %v360 = vsel %vm97, %v356, %v358
  %363 = vst [vmem:[#allocation3 + $0x30] sm:$0xff] %v359
  %364 = vst [vmem:[#allocation3 + $0x38] sm:$0xff] %v360
  %v365 = vld [vmem:[%s5 + $0x20] sm:$0xff]
  %v366 = vld [vmem:[%s5 + $0x28] sm:$0xff]
  %369 = vrot.lane.b32.xlu0 %v365, 113
  %v370 = vpop.permute.xlu0 %369
  %371 = vrot.lane.b32.xlu0 %v366, 113
  %v372 = vpop.permute.xlu0 %371
  %v373 = vsel %vm112, %v370, %v372
  %v377 = vmul.f32 %v301, %v370
  %v378 = vmul.f32 %v302, %v373
  %v379 = vmul.f32 %v303, %v372
  %383 = vrot.lane.b32.xlu0 %v377, 15
  %v384 = vpop.permute.xlu0 %383
  %385 = vrot.lane.b32.xlu0 %v378, 15
  %v386 = vpop.permute.xlu0 %385
  %387 = vrot.lane.b32.xlu0 %v379, 15
  %v388 = vpop.permute.xlu0 %387
  %v389 = vsel %vm129, %v384, %v386
  %v390 = vsel %vm129, %v386, %v388
  %393 = vst [vmem:[#allocation3 + $0x50] sm:$0xff] %v389
  %394 = vst [vmem:[#allocation3 + $0x58] sm:$0xff] %v390
  %v395 = vld [vmem:[%s5 + $0x30] sm:$0xff]
  %v396 = vld [vmem:[%s5 + $0x38] sm:$0xff]
  %399 = vrot.lane.b32.xlu0 %v395, 127
  %v400 = vpop.permute.xlu0 %399
  %401 = vrot.lane.b32.xlu0 %v396, 127
  %v402 = vpop.permute.xlu0 %401
  %v403 = vsel %vm144, %v400, %v402
  %v407 = vmul.f32 %v301, %v400
  %v408 = vmul.f32 %v302, %v403
  %v409 = vmul.f32 %v303, %v402
  %413 = vrot.lane.b32.xlu0 %v407, 1
  %v414 = vpop.permute.xlu0 %413
  %415 = vrot.lane.b32.xlu0 %v408, 1
  %v416 = vpop.permute.xlu0 %415
  %417 = vrot.lane.b32.xlu0 %v409, 1
  %v418 = vpop.permute.xlu0 %417
  %v419 = vsel %vm161, %v414, %v416
  %v420 = vsel %vm161, %v416, %v418
  %423 = vst [vmem:[#allocation3 + $0x70] sm:$0xff] %v419
  %424 = vst [vmem:[#allocation3 + $0x78] sm:$0xff] %v420
  %v425 = vld [vmem:[%s5 + $0x40] sm:$0xff]
  %v426 = vld [vmem:[%s5 + $0x48] sm:$0xff]
  %v427 = vmul.f32 %v302, %v425
  %v428 = vmul.f32 %v303, %v426
  %429 = vst [vmem:[#allocation3 + $0x90] sm:$0xff] %v427
  %430 = vst [vmem:[#allocation3 + $0x98] sm:$0xff] %v428
  %v431 = vld [vmem:[%s5 + $0x50] sm:$0xff]
  %v432 = vld [vmem:[%s5 + $0x58] sm:$0xff]
  %435 = vrot.lane.b32.xlu0 %v431, 1
  %v436 = vpop.permute.xlu0 %435
  %437 = vrot.lane.b32.xlu0 %v432, 1
  %v438 = vpop.permute.xlu0 %437
  %v439 = vsel %vm161, %v436, %v438
  %v443 = vmul.f32 %v302, %v436
  %v444 = vmul.f32 %v303, %v439
  %v445 = vmul.f32 %v304, %v438
  %449 = vrot.lane.b32.xlu0 %v443, 127
  %v450 = vpop.permute.xlu0 %449
  %451 = vrot.lane.b32.xlu0 %v444, 127
  %v452 = vpop.permute.xlu0 %451
  %453 = vrot.lane.b32.xlu0 %v445, 127
  %v454 = vpop.permute.xlu0 %453
  %v455 = vsel %vm144, %v450, %v452
  %v456 = vsel %vm144, %v452, %v454
  %459 = vst [vmem:[#allocation3 + $0xb0] sm:$0xff] %v455
  %460 = vst [vmem:[#allocation3 + $0xb8] sm:$0xff] %v456
  %v461 = vld [vmem:[%s5 + $0x60] sm:$0xff]
  %v462 = vld [vmem:[%s5 + $0x68] sm:$0xff]
  %465 = vrot.lane.b32.xlu0 %v461, 15
  %v466 = vpop.permute.xlu0 %465
  %467 = vrot.lane.b32.xlu0 %v462, 15
  %v468 = vpop.permute.xlu0 %467
  %v469 = vsel %vm129, %v466, %v468
  %v473 = vmul.f32 %v302, %v466
  %v474 = vmul.f32 %v303, %v469
  %v475 = vmul.f32 %v304, %v468
  %479 = vrot.lane.b32.xlu0 %v473, 113
  %v480 = vpop.permute.xlu0 %479
  %481 = vrot.lane.b32.xlu0 %v474, 113
  %v482 = vpop.permute.xlu0 %481
  %483 = vrot.lane.b32.xlu0 %v475, 113
  %v484 = vpop.permute.xlu0 %483
  %v485 = vsel %vm112, %v480, %v482
  %v486 = vsel %vm112, %v482, %v484
  %489 = vst [vmem:[#allocation3 + $0xd0] sm:$0xff] %v485
  %490 = vst [vmem:[#allocation3 + $0xd8] sm:$0xff] %v486
  %v491 = vld [vmem:[%s5 + $0x70] sm:$0xff]
  %v492 = vld [vmem:[%s5 + $0x78] sm:$0xff]
  %495 = vrot.lane.b32.xlu0 %v491, 16
  %v496 = vpop.permute.xlu0 %495
  %497 = vrot.lane.b32.xlu0 %v492, 16
  %v498 = vpop.permute.xlu0 %497
  %v499 = vsel %vm97, %v496, %v498
  %v503 = vmul.f32 %v302, %v496
  %v504 = vmul.f32 %v303, %v499
  %v505 = vmul.f32 %v304, %v498
  %509 = vrot.lane.b32.xlu0 %v503, 112
  %v510 = vpop.permute.xlu0 %509
  %511 = vrot.lane.b32.xlu0 %v504, 112
  %v512 = vpop.permute.xlu0 %511
  %513 = vrot.lane.b32.xlu0 %v505, 112
  %v514 = vpop.permute.xlu0 %513
  %v515 = vsel %vm80, %v510, %v512
  %v516 = vsel %vm80, %v512, %v514
  %519 = vst [vmem:[#allocation3 + $0xf0] sm:$0xff] %v515
  %520 = vst [vmem:[#allocation3 + $0xf8] sm:$0xff] %v516
  %v521 = vld [vmem:[%s5 + $0x80] sm:$0xff]
  %v522 = vld [vmem:[%s5 + $0x88] sm:$0xff]
  %525 = vrot.lane.b32.xlu0 %v521, 17
  %v526 = vpop.permute.xlu0 %525
  %527 = vrot.lane.b32.xlu0 %v522, 17
  %v528 = vpop.permute.xlu0 %527
  %v529 = vsel %vm65, %v526, %v528
  %v533 = vmul.f32 %v302, %v526
  %v534 = vmul.f32 %v303, %v529
  %v535 = vmul.f32 %v304, %v528
  %539 = vrot.lane.b32.xlu0 %v533, 111
  %v540 = vpop.permute.xlu0 %539
  %541 = vrot.lane.b32.xlu0 %v534, 111
  %v542 = vpop.permute.xlu0 %541
  %543 = vrot.lane.b32.xlu0 %v535, 111
  %v544 = vpop.permute.xlu0 %543
  %v545 = vsel %vm48, %v540, %v542
  %v546 = vsel %vm48, %v542, %v544
  %549 = vst [vmem:[#allocation3 + $0x110] sm:$0xff] %v545
  %550 = vst [vmem:[#allocation3 + $0x118] sm:$0xff] %v546
  %v551 = vld [vmem:[%s1] sm:$0xff]
  %v552 = vld [vmem:[#allocation3] sm:$0xff]
  %v553 = vld [vmem:[#allocation3 + $0x8] sm:$0xff]
  %v554 = vld [vmem:[#allocation3 + $0x10] sm:$0xff]
  %v555 = vld [vmem:[#allocation3 + $0x18] sm:$0xff]
  %v556 = vld [vmem:[#allocation3 + $0x20] sm:$0xff]
  %v557 = vld [vmem:[#allocation3 + $0x28] sm:$0xff]
  %v558 = vld [vmem:[#allocation3 + $0x30] sm:$0xff]
  %v559 = vld [vmem:[#allocation3 + $0x38] sm:$0xff]
  %v560 = vld [vmem:[#allocation3 + $0x40] sm:$0xff]
  %v561 = vld [vmem:[#allocation3 + $0x48] sm:$0xff]
  %v562 = vld [vmem:[#allocation3 + $0x50] sm:$0xff]
  %v563 = vld [vmem:[#allocation3 + $0x58] sm:$0xff]
  %v564 = vld [vmem:[#allocation3 + $0x60] sm:$0xff]
  %v565 = vld [vmem:[#allocation3 + $0x68] sm:$0xff]
  %v566 = vld [vmem:[#allocation3 + $0x70] sm:$0xff]
  %v567 = vld [vmem:[#allocation3 + $0x78] sm:$0xff]
  %v568 = vld [vmem:[#allocation3 + $0x80] sm:$0xff]
  %v569 = vld [vmem:[#allocation3 + $0x88] sm:$0xff]
  %v570 = vld [vmem:[#allocation3 + $0x90] sm:$0xff]
  %v571 = vld [vmem:[#allocation3 + $0x98] sm:$0xff]
  %v572 = vld [vmem:[#allocation3 + $0xa0] sm:$0xff]
  %v573 = vld [vmem:[#allocation3 + $0xa8] sm:$0xff]
  %v574 = vld [vmem:[#allocation3 + $0xb0] sm:$0xff]
  %v575 = vld [vmem:[#allocation3 + $0xb8] sm:$0xff]
  %v576 = vld [vmem:[#allocation3 + $0xc0] sm:$0xff]
  %v577 = vld [vmem:[#allocation3 + $0xc8] sm:$0xff]
  %v578 = vld [vmem:[#allocation3 + $0xd0] sm:$0xff]
  %v579 = vld [vmem:[#allocation3 + $0xd8] sm:$0xff]
  %v580 = vld [vmem:[#allocation3 + $0xe0] sm:$0xff]
  %v581 = vld [vmem:[#allocation3 + $0xe8] sm:$0xff]
  %v582 = vld [vmem:[#allocation3 + $0xf0] sm:$0xff]
  %v583 = vld [vmem:[#allocation3 + $0xf8] sm:$0xff]
  %v584 = vld [vmem:[#allocation3 + $0x100] sm:$0xff]
  %v585 = vld [vmem:[#allocation3 + $0x108] sm:$0xff]
  %v586 = vld [vmem:[#allocation3 + $0x110] sm:$0xff]
  %v587 = vld [vmem:[#allocation3 + $0x118] sm:$0xff]
  %v588 = vld [vmem:[%s2] sm:$0xff]
  %590 = vset.pattern.permute.xlu0 0
  %591 = vperm.xlu0 %590, %v588
  %v592 = vpop.permute.xlu0 %591
  %vm594 = vcmask 588800
  %v596 = vsel %vm594, %v551, 0
  %598 = vmatprep.subr.mxu0 %v553
  %599 = vmatpush1.msra.mxu0 %v552
  %600 = vmatprep.subr.mxu0 %v557
  %601 = vmatpush1.msra.mxu0 %v556
  %602 = vmatprep.subr.mxu0 %v561
  %603 = vmatpush1.msra.mxu0 %v560
  %604 = vmatprep.subr.mxu0 %v565
  %605 = vmatpush1.msra.mxu0 %v564
  %606 = vmatprep.subr.mxu0 %v569
  %607 = vmatpush1.msra.mxu0 %v568
  %608 = vmatprep.subr.mxu0 %v573
  %609 = vmatpush1.msra.mxu0 %v572
  %610 = vmatprep.subr.mxu0 %v577
  %611 = vmatpush1.msra.mxu0 %v576
  %612 = vmatprep.subr.mxu0 %v581
  %613 = vmatpush1.msra.mxu0 %v580
  %614 = vmatprep.subr.mxu0 %v585
  %615 = vmatpush1.msra.mxu0 %v584
  %616 = vmatprep.subr.mxu0 0.0
  %617 = vmatpush1.msra.mxu0 0.0
  %618 = vmatprep.subr.mxu0 0.0
  %619 = vmatpush1.msra.mxu0 0.0
  %620 = vmatprep.subr.mxu0 0.0
  %621 = vmatpush1.msra.mxu0 0.0
  %622 = vmatprep.subr.mxu0 0.0
  %623 = vmatpush1.msra.mxu0 0.0
  %624 = vmatprep.subr.mxu0 0.0
  %625 = vmatpush1.msra.mxu0 0.0
  %626 = vmatprep.subr.mxu0 0.0
  %627 = vmatpush1.msra.mxu0 0.0
  %628 = vmatprep.subr.mxu0 0.0
  %629 = vmatpush1.msra.mxu0 0.0
  %630 = vmatprep.subr.mxu0 0.0
  %631 = vmatpush1.msra.mxu0 0.0
  %632 = vmatprep.subr.mxu0 0.0
  %633 = vmatpush1.msra.mxu0 0.0
  %634 = vmatprep.subr.mxu0 0.0
  %635 = vmatpush1.msra.mxu0 0.0
  %636 = vmatprep.subr.mxu0 0.0
  %637 = vmatpush1.msra.mxu0 0.0
  %638 = vmatprep.subr.mxu0 0.0
  %639 = vmatpush1.msra.mxu0 0.0
  %640 = vmatprep.subr.mxu0 0.0
  %641 = vmatpush1.msra.mxu0 0.0
  %642 = vmatprep.subr.mxu0 0.0
  %643 = vmatpush1.msra.mxu0 0.0
  %644 = vmatprep.subr.mxu0 0.0
  %645 = vmatpush1.msra.mxu0 0.0
  %646 = vmatprep.subr.mxu0 0.0
  %647 = vmatpush1.msra.mxu0 0.0
  %648 = vmatprep.subr.mxu0 0.0
  %649 = vmatpush1.msra.mxu0 0.0
  %650 = vmatprep.subr.mxu0 0.0
  %651 = vmatpush1.msra.mxu0 0.0
  %652 = vmatprep.subr.mxu0 0.0
  %653 = vmatpush1.msra.mxu0 0.0
  %654 = vmatprep.subr.mxu0 0.0
  %655 = vmatpush1.msra.mxu0 0.0
  %656 = vmatprep.subr.mxu0 0.0
  %657 = vmatpush1.msra.mxu0 0.0
  %658 = vmatprep.subr.mxu0 0.0
  %659 = vmatpush1.msra.mxu0 0.0
  %660 = vmatprep.subr.mxu0 0.0
  %661 = vmatpush1.msra.mxu0 0.0
  %662 = vmatprep.mubr.f32.mxu0 0.0
  %663 = vmatmul.mubr.f32.gmra.mrb[0].mxu0 %v596
  %v664 = vpop.f32.mrb[0].mxu0
  %v665 = vadd.f32 %v592, %v664
  %v666 = vpop.f32.mrb[0].mxu0
  %v667 = vadd.f32 %v592, %v666
  %668 = vdwg.mxu0
  %669 = vmatprep.subr.mxu0 %v555
  %670 = vmatpush1.msra.mxu0 %v554
  %671 = vmatprep.subr.mxu0 %v559
  %672 = vmatpush1.msra.mxu0 %v558
  %673 = vmatprep.subr.mxu0 %v563
  %674 = vmatpush1.msra.mxu0 %v562
  %675 = vmatprep.subr.mxu0 %v567
  %676 = vmatpush1.msra.mxu0 %v566
  %677 = vmatprep.subr.mxu0 %v571
  %678 = vmatpush1.msra.mxu0 %v570
  %679 = vmatprep.subr.mxu0 %v575
  %680 = vmatpush1.msra.mxu0 %v574
  %681 = vmatprep.subr.mxu0 %v579
  %682 = vmatpush1.msra.mxu0 %v578
  %683 = vmatprep.subr.mxu0 %v583
  %684 = vmatpush1.msra.mxu0 %v582
  %685 = vmatprep.subr.mxu0 %v587
  %686 = vmatpush1.msra.mxu0 %v586
  %687 = vmatprep.subr.mxu0 0.0
  %688 = vmatpush1.msra.mxu0 0.0
  %689 = vmatprep.subr.mxu0 0.0
  %690 = vmatpush1.msra.mxu0 0.0
  %691 = vmatprep.subr.mxu0 0.0
  %692 = vmatpush1.msra.mxu0 0.0
  %693 = vmatprep.subr.mxu0 0.0
  %694 = vmatpush1.msra.mxu0 0.0
  %695 = vmatprep.subr.mxu0 0.0
  %696 = vmatpush1.msra.mxu0 0.0
  %697 = vmatprep.subr.mxu0 0.0
  %698 = vmatpush1.msra.mxu0 0.0
  %699 = vmatprep.subr.mxu0 0.0
  %700 = vmatpush1.msra.mxu0 0.0
  %701 = vmatprep.subr.mxu0 0.0
  %702 = vmatpush1.msra.mxu0 0.0
  %703 = vmatprep.subr.mxu0 0.0
  %704 = vmatpush1.msra.mxu0 0.0
  %705 = vmatprep.subr.mxu0 0.0
  %706 = vmatpush1.msra.mxu0 0.0
  %707 = vmatprep.subr.mxu0 0.0
  %708 = vmatpush1.msra.mxu0 0.0
  %709 = vmatprep.subr.mxu0 0.0
  %710 = vmatpush1.msra.mxu0 0.0
  %711 = vmatprep.subr.mxu0 0.0
  %712 = vmatpush1.msra.mxu0 0.0
  %713 = vmatprep.subr.mxu0 0.0
  %714 = vmatpush1.msra.mxu0 0.0
  %715 = vmatprep.subr.mxu0 0.0
  %716 = vmatpush1.msra.mxu0 0.0
  %717 = vmatprep.subr.mxu0 0.0
  %718 = vmatpush1.msra.mxu0 0.0
  %719 = vmatprep.subr.mxu0 0.0
  %720 = vmatpush1.msra.mxu0 0.0
  %721 = vmatprep.subr.mxu0 0.0
  %722 = vmatpush1.msra.mxu0 0.0
  %723 = vmatprep.subr.mxu0 0.0
  %724 = vmatpush1.msra.mxu0 0.0
  %725 = vmatprep.subr.mxu0 0.0
  %726 = vmatpush1.msra.mxu0 0.0
  %727 = vmatprep.subr.mxu0 0.0
  %728 = vmatpush1.msra.mxu0 0.0
  %729 = vmatprep.subr.mxu0 0.0
  %730 = vmatpush1.msra.mxu0 0.0
  %731 = vmatprep.subr.mxu0 0.0
  %732 = vmatpush1.msra.mxu0 0.0
  %733 = vmatprep.mubr.f32.mxu0 0.0
  %734 = vmatmul.mubr.f32.gmra.mrb[0].mxu0 %v596
  %v735 = vpop.f32.mrb[0].mxu0
  %v736 = vadd.f32 %v592, %v735
  %v737 = vpop.f32.mrb[0].mxu0
  %v738 = vadd.f32 %v592, %v737
  %739 = vdwg.mxu0
  %v740 = vmax.f32 %v665, 0.0
  %v741 = vmax.f32 %v667, 0.0
  %v742 = vmax.f32 %v736, 0.0
  %v743 = vmax.f32 %v738, 0.0
  %v744 = vld [vmem:[%s6] sm:$0xff]
  %v745 = vld [vmem:[%s6 + $0x8] sm:$0xff]
  %v746 = vld [vmem:[%s6 + $0x10] sm:$0xff]
  %v747 = vld [vmem:[%s6 + $0x18] sm:$0xff]
  %v748 = vld [vmem:[%s6 + $0x20] sm:$0xff]
  %v749 = vld [vmem:[%s6 + $0x28] sm:$0xff]
  %v750 = vld [vmem:[%s6 + $0x30] sm:$0xff]
  %v751 = vld [vmem:[%s6 + $0x38] sm:$0xff]
  %v752 = vld [vmem:[%s6 + $0x40] sm:$0xff]
  %v753 = vld [vmem:[%s6 + $0x48] sm:$0xff]
  %v754 = vld [vmem:[%s6 + $0x50] sm:$0xff]
  %v755 = vld [vmem:[%s6 + $0x58] sm:$0xff]
  %v756 = vld [vmem:[%s6 + $0x60] sm:$0xff]
  %v757 = vld [vmem:[%s6 + $0x68] sm:$0xff]
  %v758 = vld [vmem:[%s6 + $0x70] sm:$0xff]
  %v759 = vld [vmem:[%s6 + $0x78] sm:$0xff]
  %v760 = vld [vmem:[%s6 + $0x80] sm:$0xff]
  %v761 = vld [vmem:[%s6 + $0x88] sm:$0xff]
  %v762 = vld [vmem:[%s6 + $0x90] sm:$0xff]
  %v763 = vld [vmem:[%s6 + $0x98] sm:$0xff]
  %v764 = vld [vmem:[%s6 + $0xa0] sm:$0xff]
  %v765 = vld [vmem:[%s6 + $0xa8] sm:$0xff]
  %v766 = vld [vmem:[%s6 + $0xb0] sm:$0xff]
  %v767 = vld [vmem:[%s6 + $0xb8] sm:$0xff]
  %v768 = vld [vmem:[%s6 + $0xc0] sm:$0xff]
  %v769 = vld [vmem:[%s6 + $0xc8] sm:$0xff]
  %v770 = vld [vmem:[%s6 + $0xd0] sm:$0xff]
  %v771 = vld [vmem:[%s6 + $0xd8] sm:$0xff]
  %v772 = vld [vmem:[%s6 + $0xe0] sm:$0xff]
  %v773 = vld [vmem:[%s6 + $0xe8] sm:$0xff]
  %v774 = vld [vmem:[%s6 + $0xf0] sm:$0xff]
  %v775 = vld [vmem:[%s6 + $0xf8] sm:$0xff]
  %v776 = vld [vmem:[%s6 + $0x100] sm:$0xff]
  %v777 = vld [vmem:[%s6 + $0x108] sm:$0xff]
  %v778 = vld [vmem:[%s6 + $0x110] sm:$0xff]
  %v779 = vld [vmem:[%s6 + $0x118] sm:$0xff]
  %v780 = vld [vmem:[%s6 + $0x120] sm:$0xff]
  %v781 = vld [vmem:[%s6 + $0x128] sm:$0xff]
  %v782 = vld [vmem:[%s6 + $0x130] sm:$0xff]
  %v783 = vld [vmem:[%s6 + $0x138] sm:$0xff]
  %v784 = vld [vmem:[%s6 + $0x140] sm:$0xff]
  %v785 = vld [vmem:[%s6 + $0x148] sm:$0xff]
  %v786 = vld [vmem:[%s6 + $0x150] sm:$0xff]
  %v787 = vld [vmem:[%s6 + $0x158] sm:$0xff]
  %v788 = vld [vmem:[%s6 + $0x160] sm:$0xff]
  %v789 = vld [vmem:[%s6 + $0x168] sm:$0xff]
  %v790 = vld [vmem:[%s6 + $0x170] sm:$0xff]
  %v791 = vld [vmem:[%s6 + $0x178] sm:$0xff]
  %v792 = vld [vmem:[%s6 + $0x180] sm:$0xff]
  %v793 = vld [vmem:[%s6 + $0x188] sm:$0xff]
  %v794 = vld [vmem:[%s6 + $0x190] sm:$0xff]
  %v795 = vld [vmem:[%s6 + $0x198] sm:$0xff]
  %v796 = vld [vmem:[%s6 + $0x1a0] sm:$0xff]
  %v797 = vld [vmem:[%s6 + $0x1a8] sm:$0xff]
  %v798 = vld [vmem:[%s6 + $0x1b0] sm:$0xff]
  %v799 = vld [vmem:[%s6 + $0x1b8] sm:$0xff]
  %v800 = vld [vmem:[%s6 + $0x1c0] sm:$0xff]
  %v801 = vld [vmem:[%s6 + $0x1c8] sm:$0xff]
  %v802 = vld [vmem:[%s6 + $0x1d0] sm:$0xff]
  %v803 = vld [vmem:[%s6 + $0x1d8] sm:$0xff]
  %v804 = vld [vmem:[%s6 + $0x1e0] sm:$0xff]
  %v805 = vld [vmem:[%s6 + $0x1e8] sm:$0xff]
  %v806 = vld [vmem:[%s6 + $0x1f0] sm:$0xff]
  %v807 = vld [vmem:[%s6 + $0x1f8] sm:$0xff]
  %808 = vmatprep.subr.mxu0 0.0
  %809 = vmatpush1.msra.mxu0 %v744
  %810 = vmatprep.subr.mxu0 0.0
  %811 = vmatpush1.msra.mxu0 %v745
  %812 = vmatprep.subr.mxu0 0.0
  %813 = vmatpush1.msra.mxu0 %v746
  %814 = vmatprep.subr.mxu0 0.0
  %815 = vmatpush1.msra.mxu0 %v747
  %816 = vmatprep.subr.mxu0 0.0
  %817 = vmatpush1.msra.mxu0 %v748
  %818 = vmatprep.subr.mxu0 0.0
  %819 = vmatpush1.msra.mxu0 %v749
  %820 = vmatprep.subr.mxu0 0.0
  %821 = vmatpush1.msra.mxu0 %v750
  %822 = vmatprep.subr.mxu0 0.0
  %823 = vmatpush1.msra.mxu0 %v751
  %824 = vmatprep.subr.mxu0 0.0
  %825 = vmatpush1.msra.mxu0 %v752
  %826 = vmatprep.subr.mxu0 0.0
  %827 = vmatpush1.msra.mxu0 %v753
  %828 = vmatprep.subr.mxu0 0.0
  %829 = vmatpush1.msra.mxu0 %v754
  %830 = vmatprep.subr.mxu0 0.0
  %831 = vmatpush1.msra.mxu0 %v755
  %832 = vmatprep.subr.mxu0 0.0
  %833 = vmatpush1.msra.mxu0 %v756
  %834 = vmatprep.subr.mxu0 0.0
  %835 = vmatpush1.msra.mxu0 %v757
  %836 = vmatprep.subr.mxu0 0.0
  %837 = vmatpush1.msra.mxu0 %v758
  %838 = vmatprep.subr.mxu0 0.0
  %839 = vmatpush1.msra.mxu0 %v759
  %840 = vmatprep.subr.mxu0 0.0
  %841 = vmatpush1.msra.mxu0 %v760
  %842 = vmatprep.subr.mxu0 0.0
  %843 = vmatpush1.msra.mxu0 %v761
  %844 = vmatprep.subr.mxu0 0.0
  %845 = vmatpush1.msra.mxu0 %v762
  %846 = vmatprep.subr.mxu0 0.0
  %847 = vmatpush1.msra.mxu0 %v763
  %848 = vmatprep.subr.mxu0 0.0
  %849 = vmatpush1.msra.mxu0 %v764
  %850 = vmatprep.subr.mxu0 0.0
  %851 = vmatpush1.msra.mxu0 %v765
  %852 = vmatprep.subr.mxu0 0.0
  %853 = vmatpush1.msra.mxu0 %v766
  %854 = vmatprep.subr.mxu0 0.0
  %855 = vmatpush1.msra.mxu0 %v767
  %856 = vmatprep.subr.mxu0 0.0
  %857 = vmatpush1.msra.mxu0 %v768
  %858 = vmatprep.subr.mxu0 0.0
  %859 = vmatpush1.msra.mxu0 %v769
  %860 = vmatprep.subr.mxu0 0.0
  %861 = vmatpush1.msra.mxu0 %v770
  %862 = vmatprep.subr.mxu0 0.0
  %863 = vmatpush1.msra.mxu0 %v771
  %864 = vmatprep.subr.mxu0 0.0
  %865 = vmatpush1.msra.mxu0 %v772
  %866 = vmatprep.subr.mxu0 0.0
  %867 = vmatpush1.msra.mxu0 %v773
  %868 = vmatprep.subr.mxu0 0.0
  %869 = vmatpush1.msra.mxu0 %v774
  %870 = vmatprep.subr.mxu0 0.0
  %871 = vmatpush1.msra.mxu0 %v775
  %872 = vmatprep.mubr.f32.mxu0 %v741
  %873 = vmatmul.mubr.f32.gmra.mrb[0].mxu0 %v740
  %v874 = vpop.f32.mrb[0].mxu0
  %v875 = vadd.f32 0.0, %v874
  %v876 = vpop.f32.mrb[0].mxu0
  %877 = vdwg.mxu0
  %878 = vmatprep.subr.mxu0 0.0
  %879 = vmatpush1.msra.mxu0 %v776
  %880 = vmatprep.subr.mxu0 0.0
  %881 = vmatpush1.msra.mxu0 %v777
  %882 = vmatprep.subr.mxu0 0.0
  %883 = vmatpush1.msra.mxu0 %v778
  %884 = vmatprep.subr.mxu0 0.0
  %885 = vmatpush1.msra.mxu0 %v779
  %886 = vmatprep.subr.mxu0 0.0
  %887 = vmatpush1.msra.mxu0 %v780
  %888 = vmatprep.subr.mxu0 0.0
  %889 = vmatpush1.msra.mxu0 %v781
  %890 = vmatprep.subr.mxu0 0.0
  %891 = vmatpush1.msra.mxu0 %v782
  %892 = vmatprep.subr.mxu0 0.0
  %893 = vmatpush1.msra.mxu0 %v783
  %894 = vmatprep.subr.mxu0 0.0
  %895 = vmatpush1.msra.mxu0 %v784
  %896 = vmatprep.subr.mxu0 0.0
  %897 = vmatpush1.msra.mxu0 %v785
  %898 = vmatprep.subr.mxu0 0.0
  %899 = vmatpush1.msra.mxu0 %v786
  %900 = vmatprep.subr.mxu0 0.0
  %901 = vmatpush1.msra.mxu0 %v787
  %902 = vmatprep.subr.mxu0 0.0
  %903 = vmatpush1.msra.mxu0 %v788
  %904 = vmatprep.subr.mxu0 0.0
  %905 = vmatpush1.msra.mxu0 %v789
  %906 = vmatprep.subr.mxu0 0.0
  %907 = vmatpush1.msra.mxu0 %v790
  %908 = vmatprep.subr.mxu0 0.0
  %909 = vmatpush1.msra.mxu0 %v791
  %910 = vmatprep.subr.mxu0 0.0
  %911 = vmatpush1.msra.mxu0 %v792
  %912 = vmatprep.subr.mxu0 0.0
  %913 = vmatpush1.msra.mxu0 %v793
  %914 = vmatprep.subr.mxu0 0.0
  %915 = vmatpush1.msra.mxu0 %v794
  %916 = vmatprep.subr.mxu0 0.0
  %917 = vmatpush1.msra.mxu0 %v795
  %918 = vmatprep.subr.mxu0 0.0
  %919 = vmatpush1.msra.mxu0 %v796
  %920 = vmatprep.subr.mxu0 0.0
  %921 = vmatpush1.msra.mxu0 %v797
  %922 = vmatprep.subr.mxu0 0.0
  %923 = vmatpush1.msra.mxu0 %v798
  %924 = vmatprep.subr.mxu0 0.0
  %925 = vmatpush1.msra.mxu0 %v799
  %926 = vmatprep.subr.mxu0 0.0
  %927 = vmatpush1.msra.mxu0 %v800
  %928 = vmatprep.subr.mxu0 0.0
  %929 = vmatpush1.msra.mxu0 %v801
  %930 = vmatprep.subr.mxu0 0.0
  %931 = vmatpush1.msra.mxu0 %v802
  %932 = vmatprep.subr.mxu0 0.0
  %933 = vmatpush1.msra.mxu0 %v803
  %934 = vmatprep.subr.mxu0 0.0
  %935 = vmatpush1.msra.mxu0 %v804
  %936 = vmatprep.subr.mxu0 0.0
  %937 = vmatpush1.msra.mxu0 %v805
  %938 = vmatprep.subr.mxu0 0.0
  %939 = vmatpush1.msra.mxu0 %v806
  %940 = vmatprep.subr.mxu0 0.0
  %941 = vmatpush1.msra.mxu0 %v807
  %942 = vmatprep.mubr.f32.mxu0 %v743
  %943 = vmatmul.mubr.f32.gmra.mrb[0].mxu0 %v742
  %v944 = vpop.f32.mrb[0].mxu0
  %v945 = vadd.f32 %v875, %v944
  %v946 = vpop.f32.mrb[0].mxu0
  %947 = vdwg.mxu0
  %v948 = vld [vmem:[%s3] sm:$0xff]
  %v949 = vld [vmem:[%s3 + $0x8] sm:$0xff]
  %v950 = vld [vmem:[%s3 + $0x10] sm:$0xff]
  %v951 = vld [vmem:[%s3 + $0x18] sm:$0xff]
  %v952 = vld [vmem:[%s4] sm:$0xff]
  %v953 = vld [vmem:[%s4 + $0x8] sm:$0xff]
  %v954 = vld [vmem:[%s4 + $0x10] sm:$0xff]
  %v955 = vld [vmem:[%s4 + $0x18] sm:$0xff]
  %957 = vset.pattern.permute.xlu0 0
  %958 = vperm.xlu0 %957, %v952
  %v959 = vpop.permute.xlu0 %958
  %962 = vset.pattern.permute.xlu0 0
  %963 = vperm.xlu0 %962, %v953
  %v964 = vpop.permute.xlu0 %963
  %967 = vset.pattern.permute.xlu0 0
  %968 = vperm.xlu0 %967, %v954
  %v969 = vpop.permute.xlu0 %968
  %972 = vset.pattern.permute.xlu0 0
  %973 = vperm.xlu0 %972, %v955
  %v974 = vpop.permute.xlu0 %973
  %vm976 = vcmask 64512
  %v978 = vsel %vm976, %v948, 0
  %v981 = vsel %vm976, %v949, 0
  %v984 = vsel %vm976, %v950, 0
  %v987 = vsel %vm976, %v951, 0
  %989 = vmatprep.subr.mxu0 0.0
  %990 = vmatpush1.msra.mxu0 %v945
  %991 = vmatprep.subr.mxu0 0.0
  %992 = vmatpush1.msra.mxu0 0.0
  %993 = vmatprep.subr.mxu0 0.0
  %994 = vmatpush1.msra.mxu0 0.0
  %995 = vmatprep.subr.mxu0 0.0
  %996 = vmatpush1.msra.mxu0 0.0
  %997 = vmatprep.subr.mxu0 0.0
  %998 = vmatpush1.msra.mxu0 0.0
  %999 = vmatprep.subr.mxu0 0.0
  %1000 = vmatpush1.msra.mxu0 0.0
  %1001 = vmatprep.subr.mxu0 0.0
  %1002 = vmatpush1.msra.mxu0 0.0
  %1003 = vmatprep.subr.mxu0 0.0
  %1004 = vmatpush1.msra.mxu0 0.0
  %1005 = vmatprep.subr.mxu0 0.0
  %1006 = vmatpush1.msra.mxu0 0.0
  %1007 = vmatprep.subr.mxu0 0.0
  %1008 = vmatpush1.msra.mxu0 0.0
  %1009 = vmatprep.subr.mxu0 0.0
  %1010 = vmatpush1.msra.mxu0 0.0
  %1011 = vmatprep.subr.mxu0 0.0
  %1012 = vmatpush1.msra.mxu0 0.0
  %1013 = vmatprep.subr.mxu0 0.0
  %1014 = vmatpush1.msra.mxu0 0.0
  %1015 = vmatprep.subr.mxu0 0.0
  %1016 = vmatpush1.msra.mxu0 0.0
  %1017 = vmatprep.subr.mxu0 0.0
  %1018 = vmatpush1.msra.mxu0 0.0
  %1019 = vmatprep.subr.mxu0 0.0
  %1020 = vmatpush1.msra.mxu0 0.0
  %1021 = vmatprep.subr.mxu0 0.0
  %1022 = vmatpush1.msra.mxu0 0.0
  %1023 = vmatprep.subr.mxu0 0.0
  %1024 = vmatpush1.msra.mxu0 0.0
  %1025 = vmatprep.subr.mxu0 0.0
  %1026 = vmatpush1.msra.mxu0 0.0
  %1027 = vmatprep.subr.mxu0 0.0
  %1028 = vmatpush1.msra.mxu0 0.0
  %1029 = vmatprep.subr.mxu0 0.0
  %1030 = vmatpush1.msra.mxu0 0.0
  %1031 = vmatprep.subr.mxu0 0.0
  %1032 = vmatpush1.msra.mxu0 0.0
  %1033 = vmatprep.subr.mxu0 0.0
  %1034 = vmatpush1.msra.mxu0 0.0
  %1035 = vmatprep.subr.mxu0 0.0
  %1036 = vmatpush1.msra.mxu0 0.0
  %1037 = vmatprep.subr.mxu0 0.0
  %1038 = vmatpush1.msra.mxu0 0.0
  %1039 = vmatprep.subr.mxu0 0.0
  %1040 = vmatpush1.msra.mxu0 0.0
  %1041 = vmatprep.subr.mxu0 0.0
  %1042 = vmatpush1.msra.mxu0 0.0
  %1043 = vmatprep.subr.mxu0 0.0
  %1044 = vmatpush1.msra.mxu0 0.0
  %1045 = vmatprep.subr.mxu0 0.0
  %1046 = vmatpush1.msra.mxu0 0.0
  %1047 = vmatprep.subr.mxu0 0.0
  %1048 = vmatpush1.msra.mxu0 0.0
  %1049 = vmatprep.subr.mxu0 0.0
  %1050 = vmatpush1.msra.mxu0 0.0
  %1051 = vmatprep.subr.mxu0 0.0
  %1052 = vmatpush1.msra.mxu0 0.0
  %1053 = vmatprep.mubr.f32.mxu0 0.0
  %1054 = vmatmul.mubr.f32.gmra.mrb[0].mxu0 %v978
  %v1055 = vpop.f32.mrb[0].mxu0
  %v1056 = vadd.f32 %v959, %v1055
  %v1057 = vpop.f32.mrb[0].mxu0
  %1058 = vmatprep.mubr.f32.mxu0 0.0
  %1059 = vmatmul.mubr.f32.gmra.mrb[0].mxu0 %v981
  %v1060 = vpop.f32.mrb[0].mxu0
  %v1061 = vadd.f32 %v964, %v1060
  %v1062 = vpop.f32.mrb[0].mxu0
  %1063 = vmatprep.mubr.f32.mxu0 0.0
  %1064 = vmatmul.mubr.f32.gmra.mrb[0].mxu0 %v984
  %v1065 = vpop.f32.mrb[0].mxu0
  %v1066 = vadd.f32 %v969, %v1065
  %v1067 = vpop.f32.mrb[0].mxu0
  %1068 = vmatprep.mubr.f32.mxu0 0.0
  %1069 = vmatmul.mubr.f32.gmra.mrb[0].mxu0 %v987
  %v1070 = vpop.f32.mrb[0].mxu0
  %v1071 = vadd.f32 %v974, %v1070
  %v1072 = vpop.f32.mrb[0].mxu0
  %1073 = vdwg.mxu0
  %vm1074 = vcmask 15360
  %1075 = vst.msk [vmem:[%s7] sm:$0xff] %vm1074, %v1056
  %1076 = vst.msk [vmem:[%s7 + $0x8] sm:$0xff] %vm1074, %v1061
  %1077 = vst.msk [vmem:[%s7 + $0x10] sm:$0xff] %vm1074, %v1066
  %1078 = vst.msk [vmem:[%s7 + $0x18] sm:$0xff] %vm1074, %v1071
  // Predicated region
  $region30: #{tpu_custom_call.1} parent=0 // pred_check
    _
  $region31: #{tpu_custom_call.1} parent=0 // pred_check_branch
    %1080 = sbr.rel (0) target = $region33
  $region32: #{tpu_custom_call.1} parent=0 // pred_region
    _
  $region33: #{tpu_custom_call.1} parent=0 // pred_fallthru
    _
  // Predicated region
  $region34: #{tpu_custom_call.1} parent=0 // pred_check
    _
  $region35: #{tpu_custom_call.1} parent=0 // pred_check_branch
    %1082 = sbr.rel (0) target = $region37
  $region36: #{tpu_custom_call.1} parent=0 // pred_region
    _
  $region37: #{tpu_custom_call.1} parent=0 // pred_fallthru
    _

</llo_original>
